<compile_context>
chip_gen: v7x
topology: tpu7x:2x2x1
jax: 0.10.0
libtpu: 0.0.40
codegen_flags: <defaults>
</compile_context>

<pallas_src>
import jax
import jax.numpy as jnp
from jax.experimental import pallas as pl
from jax.experimental.pallas import tpu as pltpu


# ---------------------------------------------------------------------------
# Kernel body
# ---------------------------------------------------------------------------
def _addition_fuser_kernel(batch_ref, fused_ref, wt_ref, bias_ref, out_ref):
    # torch's fused_inputs.float(): cast narrow dtype -> f32 on the VPU
    # (no-op when already f32). wt/bias are pre-cast to f32 once at init.
    proj = jnp.dot(fused_ref[...].astype(jnp.float32), wt_ref[...],
                   preferred_element_type=jnp.float32)          # (tile_rows, E)
    proj = proj + bias_ref[...]                                  # (1, E) broadcast
    out_ref[...] = (batch_ref[...].astype(jnp.float32) + proj).astype(out_ref.dtype)


# ---------------------------------------------------------------------------
# Helpers
# ---------------------------------------------------------------------------
def _cdiv(a: int, b: int) -> int:
    return -(-a // b)


def _round_up(x: int, m: int) -> int:
    return _cdiv(x, m) * m


def _to_tpu_dtype(x):
    # TPU does not accept 64-bit inputs (PyTorch-parity callers may send them).
    if x.dtype == jnp.float64:
        return x.astype(jnp.float32)
    if x.dtype == jnp.int64:
        return x.astype(jnp.int32)
    return x


def _vmem_budget_bytes() -> int:
    """Chip-aware VMEM budget: ~half of physical, capped at 48 MiB."""
    try:
        cap = int(getattr(pltpu.get_tpu_info(), "vmem_capacity_bytes", 64 << 20))
    except Exception:
        cap = 64 << 20  # conservative fallback (v7x per-TC VMEM)
    return min(cap // 2, 48 << 20)


def prepare_fuser_params(weight, bias):
    """Hoist weight transpose AND f32 cast out of the per-call path (ONCE at init).

    weight: (embedding_dim, fused_input_dim) -> wt: (F, E) f32, bias2d: (1, E) f32.
    """
    weight = _to_tpu_dtype(weight).astype(jnp.float32)
    bias = _to_tpu_dtype(bias).astype(jnp.float32)
    E, _F = weight.shape
    return weight.T, bias.reshape(1, E)


# ---------------------------------------------------------------------------
# Wrapper
# ---------------------------------------------------------------------------
def addition_fuser(batch, fused_inputs, wt, bias2d, *,
                   tile_rows=None,
                   out_dtype=jnp.float32,
                   alias_batch=True):
    """batch: (N, E); fused_inputs: (N, F) in any narrow dtype;
    wt: (F, E) pre-transposed f32 weight; bias2d: (1, E) f32."""
    batch = _to_tpu_dtype(batch)
    fused_inputs = _to_tpu_dtype(fused_inputs)
    if wt.dtype != jnp.float32:
        wt = wt.astype(jnp.float32)
    if bias2d.dtype != jnp.float32:
        bias2d = bias2d.astype(jnp.float32)

    N, E = batch.shape
    F = fused_inputs.shape[1]
    assert fused_inputs.shape[0] == N, (fused_inputs.shape, N)
    assert wt.shape == (F, E), f"wt must be (F, E)={F, E}, got {wt.shape}"
    assert bias2d.shape == (1, E), bias2d.shape

    bb = jnp.dtype(batch.dtype).itemsize
    fb = jnp.dtype(fused_inputs.dtype).itemsize
    ob = jnp.dtype(out_dtype).itemsize

    budget = _vmem_budget_bytes()
    resident = 2 * (F * E * 4 + E * 4)  # Wt + bias (double-buffered)

    # --- Row tile selection -------------------------------------------------
    if tile_rows is None:
        # bytes per row: double-buffered I/O tiles + in-kernel f32 intermediates
        # (fused.astype(f32), f32 matmul result, batch.astype(f32)).
        per_row = 2 * (E * bb + F * fb + E * ob) + 3 * E * 4 + F * 4
        max_rows = max(8, (budget - resident) // max(per_row, 1))
        tile_rows = min(4096, int(max_rows))
        # Keep >= ~4 row blocks so the "parallel" axis feeds both v7x TensorCores.
        tile_rows = min(tile_rows, max(8, _round_up(_cdiv(N, 4), 8)))
    tile_rows = max(8, (int(tile_rows) // 8) * 8)
    if tile_rows >= N:
        tile_rows = N  # full-extent block (always legal), grid = 1
    grid_n = _cdiv(N, tile_rows)

    # --- VMEM limit & cost estimate ------------------------------------------
    dbl_buf = 2 * tile_rows * (E * bb + F * fb + E * ob)
    interm = tile_rows * (3 * E * 4 + F * 4)
    vmem_limit = int(min(max(dbl_buf + interm + resident + (4 << 20), 16 << 20),
                         budget + (8 << 20)))

    cost = pl.CostEstimate(
        flops=2 * N * E * F,
        transcendentals=0,
        bytes_accessed=(N * E * bb + N * F * fb + F * E * 4 + E * 4 + N * E * ob),
    )

    # Alias batch -> out when dtypes match (identical block shape & index map,
    # so the in-place update is safe). Callers should jit-donate batch to avoid
    # a defensive copy at the top level.
    aliases = {0: 0} if (alias_batch and batch.dtype == jnp.dtype(out_dtype)) else {}

    return pl.pallas_call(
        _addition_fuser_kernel,
        out_shape=jax.ShapeDtypeStruct((N, E), out_dtype),
        grid_spec=pltpu.PrefetchScalarGridSpec(
            num_scalar_prefetch=0,
            grid=(grid_n,),
            in_specs=[
                pl.BlockSpec((tile_rows, E), lambda i: (i, 0)),  # batch tile
                pl.BlockSpec((tile_rows, F), lambda i: (i, 0)),  # fused tile
                pl.BlockSpec((F, E), lambda i: (0, 0)),          # Wt (resident)
                pl.BlockSpec((1, E), lambda i: (0, 0)),          # bias (resident)
            ],
            out_specs=pl.BlockSpec((tile_rows, E), lambda i: (i, 0)),
        ),
        compiler_params=pltpu.CompilerParams(
            dimension_semantics=("parallel",),
            vmem_limit_bytes=vmem_limit,
        ),
        cost_estimate=cost,
        input_output_aliases=aliases,
    )(batch, fused_inputs, wt, bias2d)


# ---------------------------------------------------------------------------
# Self-test
# ---------------------------------------------------------------------------
if __name__ == "__main__":
    key = jax.random.PRNGKey(0)

    def run_case(N, FUSED_DIM, EMBED_DIM, key, fused_dtype=jnp.float32,
                 batch_dtype=jnp.float32, out_dtype=jnp.float32,
                 atol=1e-4, rtol=1e-4):
        k_batch, k_fused, k_w, k_b = jax.random.split(key, 4)
        batch = jax.random.normal(k_batch, (N, EMBED_DIM),
                                  dtype=jnp.float32).astype(batch_dtype)
        fused_inputs = jax.random.normal(
            k_fused, (N, FUSED_DIM), dtype=jnp.float32).astype(fused_dtype)

        bound = 1.0 / (FUSED_DIM ** 0.5)
        weight = jax.random.uniform(k_w, (EMBED_DIM, FUSED_DIM),
                                    minval=-bound, maxval=bound, dtype=jnp.float32)
        bias = jax.random.uniform(k_b, (EMBED_DIM,),
                                  minval=-bound, maxval=bound, dtype=jnp.float32)

        # Hoisted once (param init), not per call.
        wt, bias2d = prepare_fuser_params(weight, bias)

        out = addition_fuser(batch, fused_inputs, wt, bias2d, out_dtype=out_dtype)
        out = jax.block_until_ready(out)

        ref = (batch.astype(jnp.float32)
               + (fused_inputs.astype(jnp.float32) @ weight.T + bias))
        assert out.shape == ref.shape, (out.shape, ref.shape)
        assert jnp.allclose(out.astype(jnp.float32), ref, atol=atol, rtol=rtol), \
            f"mismatch vs reference (N={N}, F={FUSED_DIM}, E={EMBED_DIM})"

    k1, k2, k3, k4, k5 = jax.random.split(key, 5)
    # Small shapes consistent with the module (graph-embedding rows).
    run_case(N=8, FUSED_DIM=32, EMBED_DIM=128, key=k1)
    # Unaligned N and E: exercises the ragged last row-block (no HBM padding)
    # and the full-extent (masked-lane) embedding dim.
    run_case(N=13, FUSED_DIM=20, EMBED_DIM=96, key=k2)
    # Narrow fused dtype stays narrow into the kernel; cast happens on-chip.
    run_case(N=24, FUSED_DIM=32, EMBED_DIM=128, key=k3, fused_dtype=jnp.bfloat16)
    # Multi-block grid (grid ~= 4) with a ragged last block.
    run_case(N=300, FUSED_DIM=32, EMBED_DIM=128, key=k4)
    # Reduced-precision streaming mode: bf16 batch/out, f32 math on-chip.
    run_case(N=40, FUSED_DIM=32, EMBED_DIM=128, key=k5,
             fused_dtype=jnp.bfloat16, batch_dtype=jnp.bfloat16,
             out_dtype=jnp.bfloat16, atol=5e-2, rtol=5e-2)

    print("KERNEL_OK")
</pallas_src>

<mosaic_0001>
module attributes {stable_mosaic.version = 11 : i64} {
  func.func @_addition_fuser_kernel(%arg0: i32, %arg1: memref<8x128xf32, #tpu.memory_space<vmem>>, %arg2: memref<8x32xf32, #tpu.memory_space<vmem>>, %arg3: memref<32x128xf32, #tpu.memory_space<vmem>>, %arg4: memref<1x128xf32, #tpu.memory_space<vmem>>, %arg5: memref<8x128xf32, #tpu.memory_space<vmem>>) attributes {dimension_semantics = [#tpu.dimension_semantics<parallel>], iteration_bounds = array<i64: 1>, scalar_prefetch = 0 : i64, scratch_operands = 0 : i64, tpu.core_type = #tpu.core_type<tc>, window_params = [{transform_indices = @transform_0, window_bounds = array<i64: 8, 128>}, {transform_indices = @transform_1, window_bounds = array<i64: 8, 32>}, {pipeline_mode = #tpu.pipeline_mode<synchronous>, transform_indices = @transform_2, window_bounds = array<i64: 32, 128>}, {pipeline_mode = #tpu.pipeline_mode<synchronous>, transform_indices = @transform_3, window_bounds = array<i64: 1, 128>}, {transform_indices = @transform_4, window_bounds = array<i64: 8, 128>}]} {
    %c0 = arith.constant 0 : index
    %c0_0 = arith.constant 0 : index
    %0 = vector.load %arg2[%c0, %c0_0] : memref<8x32xf32, #tpu.memory_space<vmem>>, vector<8x32xf32>
    %c0_1 = arith.constant 0 : index
    %c0_2 = arith.constant 0 : index
    %1 = vector.load %arg3[%c0_1, %c0_2] : memref<32x128xf32, #tpu.memory_space<vmem>>, vector<32x128xf32>
    %cst = arith.constant dense<0.000000e+00> : vector<8x128xf32>
    %2 = tpu.matmul %0, %1, %cst {dimension_numbers = #tpu.dot_dimension_numbers<[1], [0], [0], [1], [0, 0, 1, 1], [], []>} : vector<8x32xf32>, vector<32x128xf32>, vector<8x128xf32> -> vector<8x128xf32>
    %c0_3 = arith.constant 0 : index
    %c0_4 = arith.constant 0 : index
    %3 = vector.load %arg4[%c0_3, %c0_4] : memref<1x128xf32, #tpu.memory_space<vmem>>, vector<1x128xf32>
    %4 = vector.broadcast %3 : vector<1x128xf32> to vector<8x128xf32>
    %5 = arith.addf %2, %4 : vector<8x128xf32>
    %c0_5 = arith.constant 0 : index
    %c0_6 = arith.constant 0 : index
    %6 = vector.load %arg1[%c0_5, %c0_6] : memref<8x128xf32, #tpu.memory_space<vmem>>, vector<8x128xf32>
    %7 = arith.addf %6, %5 : vector<8x128xf32>
    %c0_7 = arith.constant 0 : index
    %c0_8 = arith.constant 0 : index
    %8 = vector.load %arg5[%c0_7, %c0_8] : memref<8x128xf32, #tpu.memory_space<vmem>>, vector<8x128xf32>
    tpu.vector_store %arg5[%c0_7, %c0_8], %7 {strides = array<i32>} : memref<8x128xf32, #tpu.memory_space<vmem>>, vector<8x128xf32>,
    return
  }
  func.func @transform_0(%arg0: i32) -> (i32, i32) {
    %c0_i32 = arith.constant 0 : i32
    %c0_i32_0 = arith.constant 0 : i32
    return %arg0, %c0_i32 : i32, i32
  }
  func.func @transform_1(%arg0: i32) -> (i32, i32) {
    %c0_i32 = arith.constant 0 : i32
    %c0_i32_0 = arith.constant 0 : i32
    return %arg0, %c0_i32 : i32, i32
  }
  func.func @transform_2(%arg0: i32) -> (i32, i32) {
    %c0_i32 = arith.constant 0 : i32
    %c0_i32_0 = arith.constant 0 : i32
    %c0_i32_1 = arith.constant 0 : i32
    return %c0_i32, %c0_i32_0 : i32, i32
  }
  func.func @transform_3(%arg0: i32) -> (i32, i32) {
    %c0_i32 = arith.constant 0 : i32
    %c0_i32_0 = arith.constant 0 : i32
    %c0_i32_1 = arith.constant 0 : i32
    return %c0_i32, %c0_i32_0 : i32, i32
  }
  func.func @transform_4(%arg0: i32) -> (i32, i32) {
    %c0_i32 = arith.constant 0 : i32
    %c0_i32_0 = arith.constant 0 : i32
    return %arg0, %c0_i32 : i32, i32
  }
}

</mosaic_0001>

<llo_original>
// kernel: tpu_custom_call.1
$region0: #{tpu_custom_call.1}
  #allocation0 [shape = 'u32[]', space=smem, size = 0x4, offset = 0x4, fixed_abs, tag = 'smem constant byte address 0x4 - core index']
  #allocation1 [shape = 'u32[144,128]{1,0:T(1,128)}', space=vmem, size = 0x12000, scoped, tag = 'internal scratch']
  %s0 = inlined_call_operand.hbm [shape: f32[8,128], index: 0, kind: input, shape index: {}, may-alias: {0,4}]
  %s1 = inlined_call_operand.vmem [shape: f32[8,32], index: 1, kind: input, shape index: {}]
  %s2 = inlined_call_operand.hbm [shape: f32[32,128], index: 2, kind: input, shape index: {}]
  %s3 = inlined_call_operand.vmem [shape: f32[1,128], index: 3, kind: input, shape index: {}]
  %s4 = inlined_call_operand.hbm [shape: f32[8,128], index: 4, kind: output, shape index: {}, may-alias: {0,4}]
  %s5 = sld [smem:[#allocation0]]
  $region34: #{tpu_custom_call.1} parent=0
    _
  %s7 = ssub.s32 1, %s5
  %s8 = scalar_select 0, %s7, %s5
  $region1: #{tpu_custom_call.1} parent=0
    #allocation2 [shape = 'u8[4096]{0}', space=vmem, size = 0x1000, scoped, tag = 'input window, operand 0, single buffered']
    #allocation3 [shape = 's32[1]{0}', space=sflag, size = 0x4, scoped, tag = 'scoped memory for tpu_custom_call.1']
    #allocation4 [shape = 's32[1]{0}', space=sflag, size = 0x4, scoped, tag = 'scoped memory for tpu_custom_call.1']
    #allocation5 [shape = 'u8[16384]{0}', space=vmem, size = 0x4000, scoped, tag = 'input window, operand 2, single buffered']
    #allocation6 [shape = 's32[1]{0}', space=sflag, size = 0x4, scoped, tag = 'scoped memory for tpu_custom_call.1']
    #allocation7 [shape = 'u8[4096]{0}', space=vmem, size = 0x1000, scoped, tag = 'output window, operand 0, single buffered']
    %9 = vsyncpa [#allocation3], 0
    %10 = vsyncpa [#allocation6], 0
    %11 = vsyncpa [#allocation4], 0
    // Predicated region
    $region2: #{tpu_custom_call.1} parent=1 // pred_check
      _
    $region3: #{tpu_custom_call.1} parent=1 // pred_check_branch
      %13 = sbr.rel (0) target = $region5
    $region4: #{tpu_custom_call.1} parent=1 // pred_region
      %s15 = ssub.s32 128, 128
      %16 = vsyncadd [#allocation3], %s15
      %s18 = sshll.u32 [#allocation2], 4
      %s19 = int_to_ptr.vmem [resolvable:$true] %s18
      %21 = dma.hbm_to_vmem [thread:$0]  %s0, 128, %s19, [#allocation3]
    $region5: #{tpu_custom_call.1} parent=1 // pred_fallthru
      _
    // Predicated region
    $region6: #{tpu_custom_call.1} parent=1 // pred_check
      _
    $region7: #{tpu_custom_call.1} parent=1 // pred_check_branch
      %23 = sbr.rel (0) target = $region9
    $region8: #{tpu_custom_call.1} parent=1 // pred_region
      _
    $region9: #{tpu_custom_call.1} parent=1 // pred_fallthru
      _
    // Predicated region
    $region10: #{tpu_custom_call.1} parent=1 // pred_check
      _
    $region11: #{tpu_custom_call.1} parent=1 // pred_check_branch
      %25 = sbr.rel (0) target = $region13
    $region12: #{tpu_custom_call.1} parent=1 // pred_region
      %s27 = ssub.s32 512, 512
      %28 = vsyncadd [#allocation6], %s27
      %s29 = sshll.u32 [#allocation5], 4
      %s30 = int_to_ptr.vmem [resolvable:$true] %s29
      %35 = dma.hbm_to_vmem [thread:$0]  %s2, 512, %s30, [#allocation6], 128, 128, 8
    $region13: #{tpu_custom_call.1} parent=1 // pred_fallthru
      _
    // Predicated region
    $region14: #{tpu_custom_call.1} parent=1 // pred_check
      _
    $region15: #{tpu_custom_call.1} parent=1 // pred_check_branch
      %37 = sbr.rel (0) target = $region17
    $region16: #{tpu_custom_call.1} parent=1 // pred_region
      _
    $region17: #{tpu_custom_call.1} parent=1 // pred_fallthru
      _
    // Predicated region
    $region18: #{tpu_custom_call.1} parent=1 // pred_check
      _
    $region19: #{tpu_custom_call.1} parent=1 // pred_check_branch
      %39 = sbr.rel (0) target = $region21
    $region20: #{tpu_custom_call.1} parent=1 // pred_region
      %40 = dma.done [#allocation3], 128
    $region21: #{tpu_custom_call.1} parent=1 // pred_fallthru
      _
    // Predicated region
    $region22: #{tpu_custom_call.1} parent=1 // pred_check
      _
    $region23: #{tpu_custom_call.1} parent=1 // pred_check_branch
      %42 = sbr.rel (0) target = $region25
    $region24: #{tpu_custom_call.1} parent=1 // pred_region
      %43 = dma.done [#allocation6], 512
    $region25: #{tpu_custom_call.1} parent=1 // pred_fallthru
      _
    %v44 = vld [vmem:[%s1] sm:$0xff]
    %v45 = vld [vmem:[#allocation5] sm:$0xff]
    %v46 = vld [vmem:[#allocation5 + $0x8] sm:$0xff]
    %v47 = vld [vmem:[#allocation5 + $0x10] sm:$0xff]
    %v48 = vld [vmem:[#allocation5 + $0x18] sm:$0xff]
    %v49 = vld [vmem:[%s3] sm:$0x1]
    %v51 = vlaneseq
    %v52 = vshrl.u32 %v51, 7
    %v53 = vsub.s32 0, %v52
    %v54 = vrot.slane %v49, %v53
    %vm56 = vcmask 261120
    %v58 = vsel %vm56, %v44, 0
    %60 = vmatprep.subr.mxu0 0.0
    %61 = vmatpush1.msra.mxu0 %v45
    %62 = vmatprep.subr.mxu0 0.0
    %63 = vmatpush1.msra.mxu0 %v46
    %64 = vmatprep.subr.mxu0 0.0
    %65 = vmatpush1.msra.mxu0 %v47
    %66 = vmatprep.subr.mxu0 0.0
    %67 = vmatpush1.msra.mxu0 %v48
    %68 = vmatprep.subr.mxu0 0.0
    %69 = vmatpush1.msra.mxu0 0.0
    %70 = vmatprep.subr.mxu0 0.0
    %71 = vmatpush1.msra.mxu0 0.0
    %72 = vmatprep.subr.mxu0 0.0
    %73 = vmatpush1.msra.mxu0 0.0
    %74 = vmatprep.subr.mxu0 0.0
    %75 = vmatpush1.msra.mxu0 0.0
    %76 = vmatprep.subr.mxu0 0.0
    %77 = vmatpush1.msra.mxu0 0.0
    %78 = vmatprep.subr.mxu0 0.0
    %79 = vmatpush1.msra.mxu0 0.0
    %80 = vmatprep.subr.mxu0 0.0
    %81 = vmatpush1.msra.mxu0 0.0
    %82 = vmatprep.subr.mxu0 0.0
    %83 = vmatpush1.msra.mxu0 0.0
    %84 = vmatprep.subr.mxu0 0.0
    %85 = vmatpush1.msra.mxu0 0.0
    %86 = vmatprep.subr.mxu0 0.0
    %87 = vmatpush1.msra.mxu0 0.0
    %88 = vmatprep.subr.mxu0 0.0
    %89 = vmatpush1.msra.mxu0 0.0
    %90 = vmatprep.subr.mxu0 0.0
    %91 = vmatpush1.msra.mxu0 0.0
    %92 = vmatprep.subr.mxu0 0.0
    %93 = vmatpush1.msra.mxu0 0.0
    %94 = vmatprep.subr.mxu0 0.0
    %95 = vmatpush1.msra.mxu0 0.0
    %96 = vmatprep.subr.mxu0 0.0
    %97 = vmatpush1.msra.mxu0 0.0
    %98 = vmatprep.subr.mxu0 0.0
    %99 = vmatpush1.msra.mxu0 0.0
    %100 = vmatprep.subr.mxu0 0.0
    %101 = vmatpush1.msra.mxu0 0.0
    %102 = vmatprep.subr.mxu0 0.0
    %103 = vmatpush1.msra.mxu0 0.0
    %104 = vmatprep.subr.mxu0 0.0
    %105 = vmatpush1.msra.mxu0 0.0
    %106 = vmatprep.subr.mxu0 0.0
    %107 = vmatpush1.msra.mxu0 0.0
    %108 = vmatprep.subr.mxu0 0.0
    %109 = vmatpush1.msra.mxu0 0.0
    %110 = vmatprep.subr.mxu0 0.0
    %111 = vmatpush1.msra.mxu0 0.0
    %112 = vmatprep.subr.mxu0 0.0
    %113 = vmatpush1.msra.mxu0 0.0
    %114 = vmatprep.subr.mxu0 0.0
    %115 = vmatpush1.msra.mxu0 0.0
    %116 = vmatprep.subr.mxu0 0.0
    %117 = vmatpush1.msra.mxu0 0.0
    %118 = vmatprep.subr.mxu0 0.0
    %119 = vmatpush1.msra.mxu0 0.0
    %120 = vmatprep.subr.mxu0 0.0
    %121 = vmatpush1.msra.mxu0 0.0
    %122 = vmatprep.subr.mxu0 0.0
    %123 = vmatpush1.msra.mxu0 0.0
    %124 = vmatprep.mubr.f32.mxu0 0.0
    %125 = vmatmul.mubr.f32.gmra.mrb[0].mxu0 %v58
    %v126 = vpop.f32.mrb[0].mxu0
    %v127 = vadd.f32 %v54, %v126
    %v128 = vpop.f32.mrb[0].mxu0
    %129 = vdwg.mxu0
    %v130 = vld [vmem:[#allocation2] sm:$0xff]
    %v131 = vadd.f32 %v130, %v127
    %132 = vst [vmem:[#allocation7] sm:$0xff] %v131
    // Predicated region
    $region26: #{tpu_custom_call.1} parent=1 // pred_check
      _
    $region27: #{tpu_custom_call.1} parent=1 // pred_check_branch
      %134 = sbr.rel (0) target = $region29
    $region28: #{tpu_custom_call.1} parent=1 // pred_region
      %s136 = ssub.s32 128, 128
      %137 = vsyncadd [#allocation4], %s136
      %s139 = sshll.u32 [#allocation7], 4
      %s140 = int_to_ptr.vmem [resolvable:$true] %s139
      %142 = dma.vmem_to_hbm [thread:$0]  %s140, 128, %s4, [#allocation4]
    $region29: #{tpu_custom_call.1} parent=1 // pred_fallthru
      _
    // Predicated region
    $region30: #{tpu_custom_call.1} parent=1 // pred_check
      _
    $region31: #{tpu_custom_call.1} parent=1 // pred_check_branch
      %144 = sbr.rel (0) target = $region33
    $region32: #{tpu_custom_call.1} parent=1 // pred_region
      %145 = dma.done [#allocation4], 128
    $region33: #{tpu_custom_call.1} parent=1 // pred_fallthru
      _
    %146 = vsyncpa [#allocation3], 1
    %147 = vsyncpa [#allocation6], 1
    %148 = vsyncpa [#allocation4], 1

</llo_original>
